<compile_context>
chip_gen: v7x
topology: tpu7x:2x2x1
jax: 0.10.0
libtpu: 0.0.40
codegen_flags: <defaults>
</compile_context>

<pallas_src>
import numpy as np

import jax
import jax.numpy as jnp
from jax.experimental import pallas as pl
from jax.experimental.pallas import tpu as pltpu

# ----------------------------- static module config (from __init__) -----------------------------
ANCHORS = [[10, 13], [16, 30], [33, 23], [30, 61], [62, 45], [59, 119],
           [116, 90], [156, 198], [373, 326]]
ANCHORS_MASK = [[6, 7, 8], [3, 4, 5], [0, 1, 2]]
BALANCE = [0.4, 1.0, 4]
NUM_CLASSES = 4
IMG_SIZE = (416, 416)                       # (w, h)
BBOX_ATTRS = 5 + NUM_CLASSES
THRESHOLD = 4
LABEL_SMOOTHING = 0.0
BOX_RATIO = 0.05
OBJ_RATIO = 1.0 * (416 * 416) / 416 ** 2
CLS_RATIO = 0.5 * (NUM_CLASSES / 1)
EPS = 1e-7
# BCE(clip(sigmoid(z), eps, 1-eps), t) == softplus(clip(z, -CAP, CAP)) - t * clip(z, -CAP, CAP)
_LOGIT_CAP = float(np.log((1.0 - EPS) / EPS))

_VMEM_LIMIT = 32 * 1024 * 1024              # blocks are tiny; fits v5e/v6e/v7x comfortably


def _bce_with_logits(z, t):
    """Numerically-stable BCE on raw logits, matching BCE(clip(sigmoid(z), eps, 1-eps), t)."""
    zc = jnp.clip(z, -_LOGIT_CAP, _LOGIT_CAP)
    # softplus(zc) - t*zc, written with ops guaranteed to lower in Mosaic
    return jnp.maximum(zc, 0.0) + jnp.log(1.0 + jnp.exp(-jnp.abs(zc))) - t * zc


# ================================ inference-branch decode kernel ================================
def _make_decode_kernel():
    def kernel(gxy_ref, scale2_ref, anc_ref, pred_ref, out_ref):
        p = pred_ref[...]                                  # (A, HW) raw logits
        s_box = jax.nn.sigmoid(p[0:4, :])                  # (4, HW)
        # boxes already in input-image pixels (stride folded into gxy / scale2 / anc)
        out_ref[0:2, :] = s_box[0:2, :] * scale2_ref[...] + gxy_ref[...]
        out_ref[2:4, :] = (s_box[2:4, :] * 2.0) ** 2 * anc_ref[...]
        # objectness + classes: plain sigmoid, written straight to the output rows
        out_ref[4:, :] = jax.nn.sigmoid(p[4:, :])
    return kernel


# ================================== training-branch loss kernel ==================================
def _make_loss_kernel(C, stride_h, with_extras):
    def kernel(gxy_ref, anc_ref, pred_ref, yt_ref, *out_refs):
        if with_extras:
            iou_ref, pbox_ref, yts_ref, sums_ref = out_refs
        else:
            (sums_ref,) = out_refs

        p = pred_ref[...]                                  # (A, HW) raw logits
        yt = yt_ref[...]                                   # (A, HW)
        gxy = gxy_ref[...]                                 # (2, HW) == grid_xy - 0.5
        anc = anc_ref[...]                                 # (2, 1)  scaled anchor (w, h)

        # get_pred_boxes (grid units) -- only 4 sigmoids needed here
        s_box = jax.nn.sigmoid(p[0:4, :])
        pxy = s_box[0:2, :] * 2.0 + gxy                    # (2, HW)
        pwh = (s_box[2:4, :] * 2.0) ** 2 * anc             # (2, HW)

        txy = yt[0:2, :]
        twh = yt[2:4, :]
        tconf = yt[4:5, :]                                 # (1, HW)
        tcls = yt[5:, :]                                   # (C, HW)

        # box_giou
        b1_min = pxy - pwh * 0.5
        b1_max = pxy + pwh * 0.5
        b2_min = txy - twh * 0.5
        b2_max = txy + twh * 0.5
        inter_wh = jnp.maximum(jnp.minimum(b1_max, b2_max) - jnp.maximum(b1_min, b2_min), 0.0)
        inter = inter_wh[0:1, :] * inter_wh[1:2, :]        # (1, HW)
        area_p = pwh[0:1, :] * pwh[1:2, :]
        area_t = twh[0:1, :] * twh[1:2, :]
        union = area_p + area_t - inter
        enc_wh = jnp.maximum(jnp.maximum(b1_max, b2_max) - jnp.minimum(b1_min, b2_min), 0.0)
        enc = enc_wh[0:1, :] * enc_wh[1:2, :]
        # union >= area_p > 0 and enc >= area_p > 0 (predicted boxes always have area),
        # so the fast approximate reciprocal is safe.
        iou = inter * pl.reciprocal(union, approx=True)
        giou = iou - (enc - union) * pl.reciprocal(enc, approx=True)

        obj = (tconf == 1.0).astype(jnp.float32)           # (1, HW)
        n_obj = jnp.sum(obj)
        sum_loc = jnp.sum(obj * (1.0 - giou))

        # class BCE (logits form); only positive cells contribute
        if LABEL_SMOOTHING:
            tgt_cls = tcls * (1.0 - LABEL_SMOOTHING) + LABEL_SMOOTHING / C
        else:
            tgt_cls = tcls
        sum_cls = jnp.sum(obj * _bce_with_logits(p[5:, :], tgt_cls))

        # objectness BCE against clamp(giou, 0) on positive cells (0 elsewhere), over all cells
        tobj = obj * jnp.maximum(giou, 0.0)
        sum_conf = jnp.sum(_bce_with_logits(p[4:5, :], tobj))

        if with_extras:
            iou_ref[...] = iou
            pbox_ref[0:2, :] = pxy * stride_h              # fused stride scaling
            pbox_ref[2:4, :] = pwh * stride_h
            yts_ref[...] = yt * stride_h                   # torch scales all attrs by stride_h

        # per-block partials packed into lanes 0..3 of a lane-dense (1, 128) row
        lane = jax.lax.broadcasted_iota(jnp.int32, (1, 128), 1)
        sums_ref[...] = jnp.where(
            lane == 0, n_obj,
            jnp.where(lane == 1, sum_loc,
                      jnp.where(lane == 2, sum_cls,
                                jnp.where(lane == 3, sum_conf, 0.0))))
    return kernel


# ================================== host-side target assignment ==================================
def _get_near_points(x, y, i, j):
    sub_x = x - i
    sub_y = y - j
    if sub_x > 0.5 and sub_y > 0.5:
        return [[0, 0], [1, 0], [0, 1]]
    elif sub_x < 0.5 and sub_y > 0.5:
        return [[0, 0], [-1, 0], [0, 1]]
    elif sub_x < 0.5 and sub_y < 0.5:
        return [[0, 0], [-1, 0], [0, -1]]
    else:
        return [[0, 0], [1, 0], [0, -1]]


def _get_target_np(l, targets, scaled_anchors, in_h, in_w):
    # Note: the torch module calls get_target(l, targets, anchors, in_h, in_w) against a
    # signature of (l, targets, anchors, in_w, in_h); with square grids the swap is a no-op.
    bs = len(targets)
    na = len(ANCHORS_MASK[l])
    no_obj_mask = np.ones((bs, na, in_h, in_w), np.float32)
    box_best_ratio = np.zeros((bs, na, in_h, in_w), np.float32)
    y_true = np.zeros((bs, na, in_h, in_w, BBOX_ATTRS), np.float32)
    anchors_arr = np.array(scaled_anchors, np.float32)                  # (9, 2)

    for b in range(bs):
        if len(targets[b]) == 0:
            continue
        bt = np.zeros_like(targets[b], dtype=np.float32)
        bt[:, [0, 2]] = targets[b][:, [1, 3]] * in_w
        bt[:, [1, 3]] = targets[b][:, [2, 4]] * in_h
        bt[:, 4] = targets[b][:, 0]

        r_gt_a = bt[:, None, 2:4] / anchors_arr[None]
        r_a_gt = anchors_arr[None] / bt[:, None, 2:4]
        ratios = np.concatenate([r_a_gt, r_gt_a], axis=-1)
        max_ratios = ratios.max(-1)                                     # (nt, 9)

        for t in range(bt.shape[0]):
            ratio = max_ratios[t]
            over = ratio < THRESHOLD
            over[int(np.argmin(ratio))] = True
            for k, mask in enumerate(ANCHORS_MASK[l]):
                if not over[mask]:
                    continue
                i = int(np.floor(bt[t, 0]))
                j = int(np.floor(bt[t, 1]))
                for off in _get_near_points(bt[t, 0], bt[t, 1], i, j):
                    li, lj = i + off[0], j + off[1]
                    if li >= in_w or li < 0 or lj >= in_h or lj < 0:
                        continue
                    if box_best_ratio[b, k, lj, li] != 0:
                        if box_best_ratio[b, k, lj, li] > ratio[mask]:
                            y_true[b, k, lj, li, :] = 0
                        else:
                            continue
                    c = int(bt[t, 4])
                    no_obj_mask[b, k, lj, li] = 0
                    y_true[b, k, lj, li, 0:4] = bt[t, 0:4]
                    y_true[b, k, lj, li, 4] = 1
                    y_true[b, k, lj, li, c + 5] = 1
                    box_best_ratio[b, k, lj, li] = ratio[mask]
    return y_true, no_obj_mask


# ========================================= forward wrapper =======================================
def yolo_loss_forward(inp, targets=None, return_extras=True):
    inp = jnp.asarray(inp, jnp.float32)
    bs, _, in_h, in_w = inp.shape
    l = 0
    if in_h == 26:
        l = 1
    elif in_h == 52:
        l = 2
    na = len(ANCHORS_MASK[l])
    A = BBOX_ATTRS
    C = NUM_CLASSES
    HW = in_h * in_w
    stride_h = IMG_SIZE[1] / in_h
    stride_w = IMG_SIZE[0] / in_w
    scaled_anchors = [(a_w / stride_w, a_h / stride_h) for a_w, a_h in ANCHORS]
    anchors_l = np.array([scaled_anchors[m] for m in ANCHORS_MASK[l]], np.float32)   # (na, 2)

    # NCHW -> (bs, na, A, HW): contiguous reshape (free), matches torch .view(bs, na, A, H, W)
    pred = inp.reshape(bs, na, A, HW)

    # Small host-built constants: grid-cell coords + per-anchor (w, h).  Avoids in-kernel
    # integer div/mod (13/26/52 are not powers of two) and the nested-where anchor broadcast.
    ii = np.arange(HW, dtype=np.float32)
    gx = ii % np.float32(in_w)
    gy = np.floor(ii / np.float32(in_w))

    cparams = pltpu.CompilerParams(
        dimension_semantics=("parallel", "parallel"),
        vmem_limit_bytes=_VMEM_LIMIT)

    if targets is None:
        gxy_dec = jnp.asarray(np.stack([(gx - 0.5) * stride_w, (gy - 0.5) * stride_h]),
                              jnp.float32)                                     # (2, HW)
        scale2 = jnp.asarray(np.array([[2.0 * stride_w], [2.0 * stride_h]], np.float32))
        anc_px = jnp.asarray(
            (anchors_l * np.array([[stride_w, stride_h]], np.float32)).reshape(na, 2, 1),
            jnp.float32)
        cells = bs * na * HW
        out = pl.pallas_call(
            _make_decode_kernel(),
            out_shape=jax.ShapeDtypeStruct((bs, na, A, HW), jnp.float32),
            grid=(bs, na),
            in_specs=[
                pl.BlockSpec((2, HW), lambda b, a: (0, 0)),
                pl.BlockSpec((2, 1), lambda b, a: (0, 0)),
                pl.BlockSpec((None, 2, 1), lambda b, a: (a, 0, 0)),
                pl.BlockSpec((None, None, A, HW), lambda b, a: (b, a, 0, 0)),
            ],
            out_specs=pl.BlockSpec((None, None, A, HW), lambda b, a: (b, a, 0, 0)),
            compiler_params=cparams,
            cost_estimate=pl.CostEstimate(
                flops=int(cells * 12),
                transcendentals=int(cells * A),
                bytes_accessed=int(8 * bs * na * A * HW)),
        )(gxy_dec, scale2, anc_px, pred)
        # (bs, na, A, HW) -> (bs, na*HW, A): same flattening order as torch .view(bs, -1, A)
        return jnp.transpose(out, (0, 1, 3, 2)).reshape(bs, na * HW, A)

    # ----------------------------------- training branch -----------------------------------
    # TODO(synk): get_target is data-dependent Python looping over ground-truth boxes — no
    # clean Pallas equivalent; it runs host-side in numpy and the dense y_true is shipped to
    # the device (building it on-device from a sparse index list / overlapping the transfer
    # is the remaining end-to-end bottleneck at large batch sizes).
    y_true_np, _ = _get_target_np(l, targets, scaled_anchors, in_h, in_w)
    y_true = jnp.asarray(
        np.ascontiguousarray(np.transpose(y_true_np, (0, 1, 4, 2, 3))).reshape(bs, na, A, HW),
        jnp.float32)
    obj_mask = jnp.asarray(y_true_np[..., 4].reshape(bs, na, HW) == 1.0)

    gxy = jnp.asarray(np.stack([gx, gy]) - np.float32(0.5), jnp.float32)        # (2, HW)
    anc = jnp.asarray(anchors_l.reshape(na, 2, 1), jnp.float32)                 # grid units

    out_shape = []
    out_specs = []
    if return_extras:
        out_shape += [jax.ShapeDtypeStruct((bs, na, 1, HW), jnp.float32),
                      jax.ShapeDtypeStruct((bs, na, 4, HW), jnp.float32),
                      jax.ShapeDtypeStruct((bs, na, A, HW), jnp.float32)]
        out_specs += [pl.BlockSpec((None, None, 1, HW), lambda b, a: (b, a, 0, 0)),
                      pl.BlockSpec((None, None, 4, HW), lambda b, a: (b, a, 0, 0)),
                      pl.BlockSpec((None, None, A, HW), lambda b, a: (b, a, 0, 0))]
    out_shape += [jax.ShapeDtypeStruct((bs, na, 1, 128), jnp.float32)]
    out_specs += [pl.BlockSpec((None, None, 1, 128), lambda b, a: (b, a, 0, 0))]

    cells = bs * na * HW
    extra_rows = (1 + 4 + A) if return_extras else 0
    outs = pl.pallas_call(
        _make_loss_kernel(C, stride_h, return_extras),
        out_shape=tuple(out_shape),
        grid=(bs, na),
        in_specs=[
            pl.BlockSpec((2, HW), lambda b, a: (0, 0)),
            pl.BlockSpec((None, 2, 1), lambda b, a: (a, 0, 0)),
            pl.BlockSpec((None, None, A, HW), lambda b, a: (b, a, 0, 0)),
            pl.BlockSpec((None, None, A, HW), lambda b, a: (b, a, 0, 0)),
        ],
        out_specs=tuple(out_specs),
        compiler_params=cparams,
        cost_estimate=pl.CostEstimate(
            flops=int(cells * 80),
            transcendentals=int(cells * (4 + 2 * (C + 1) + 2)),
            bytes_accessed=int(4 * cells * (2 * A + extra_rows) + 4 * bs * na * 128)),
    )(gxy, anc, pred, y_true)

    # combine per-(b, anchor) partial sums: lanes 0..3 = [n_obj, sum_loc, sum_cls, sum_conf]
    tot = jnp.sum(outs[-1], axis=(0, 1, 2))                 # (128,)
    n = tot[0]
    loss_loc = tot[1] / jnp.maximum(n, 1.0)
    loss_cls = tot[2] / jnp.maximum(n * C, 1.0)
    loss = jnp.where(n > 0, loss_loc * BOX_RATIO + loss_cls * CLS_RATIO, 0.0)
    loss = loss + (tot[3] / float(bs * na * HW)) * BALANCE[l] * OBJ_RATIO

    if not return_extras:
        return loss

    iou, pbox_scaled, ytrue_scaled = outs[0], outs[1], outs[2]
    # TODO(synk): torch returns dynamically-shaped boolean-masked slices (iou[mask],
    # y_true[mask]*stride_h, pred_boxes[mask]*stride_h); JAX needs static shapes, so the
    # full tensors plus the object mask are returned instead (stride scaling is already
    # fused into the kernel writes).
    return loss, iou.reshape(bs, na, HW), obj_mask, ytrue_scaled, pbox_scaled


# ============================================== main ==============================================
if __name__ == "__main__":
    key = jax.random.PRNGKey(0)
    bs, in_h, in_w = 2, 13, 13                  # 13x13 head -> l = 0, stride 32
    ch = 3 * BBOX_ATTRS                         # 3 anchors * (5 + num_classes) = 27
    x = jax.random.normal(key, (bs, ch, in_h, in_w), dtype=jnp.float32)

    # inference branch (targets=None): decoded boxes, matching torch output layout (bs, 3*H*W, 5+C)
    decoded = yolo_loss_forward(x, targets=None)
    decoded = jax.block_until_ready(decoded)
    assert decoded.shape == (bs, 3 * in_h * in_w, BBOX_ATTRS)
    assert bool(jnp.all(jnp.isfinite(decoded)))

    # training branch: synthetic ground-truth boxes, rows = [class, cx, cy, w, h] (normalized)
    targets = [
        np.array([[0, 0.30, 0.40, 0.20, 0.25],
                  [2, 0.65, 0.55, 0.40, 0.35]], dtype=np.float32),
        np.array([[1, 0.50, 0.50, 0.60, 0.50]], dtype=np.float32),
    ]
    loss, iou, obj_mask, ytrue_s, pbox_s = yolo_loss_forward(x, targets=targets)
    loss = jax.block_until_ready(loss)
    assert np.isfinite(np.asarray(loss)), "loss is not finite"
    assert iou.shape == (bs, 3, in_h * in_w)
    assert pbox_s.shape == (bs, 3, 4, in_h * in_w)
    assert ytrue_s.shape == (bs, 3, BBOX_ATTRS, in_h * in_w)

    # loss-only path (skips iou / pred_boxes / scaled y_true HBM writeback)
    loss_only = jax.block_until_ready(yolo_loss_forward(x, targets=targets, return_extras=False))
    assert np.isfinite(np.asarray(loss_only)), "loss-only path is not finite"
    assert np.allclose(np.asarray(loss), np.asarray(loss_only), rtol=1e-5, atol=1e-5)

    print("KERNEL_OK")
</pallas_src>

<mosaic_0001>
module attributes {stable_mosaic.version = 11 : i64} {
  func.func @kernel(%arg0: i32, %arg1: i32, %arg2: memref<2x169xf32, #tpu.memory_space<vmem>>, %arg3: memref<2x1xf32, #tpu.memory_space<vmem>>, %arg4: memref<1x2x1xf32, #tpu.memory_space<vmem>>, %arg5: memref<1x1x9x169xf32, #tpu.memory_space<vmem>>, %arg6: memref<1x1x9x169xf32, #tpu.memory_space<vmem>>) attributes {dimension_semantics = [#tpu.dimension_semantics<parallel>, #tpu.dimension_semantics<parallel>], iteration_bounds = array<i64: 2, 3>, scalar_prefetch = 0 : i64, scratch_operands = 0 : i64, tpu.core_type = #tpu.core_type<tc>, window_params = [{pipeline_mode = #tpu.pipeline_mode<synchronous>, transform_indices = @transform_0, window_bounds = array<i64: 2, 169>}, {pipeline_mode = #tpu.pipeline_mode<synchronous>, transform_indices = @transform_1, window_bounds = array<i64: 2, 1>}, {transform_indices = @transform_2, window_bounds = array<i64: 1, 2, 1>}, {transform_indices = @transform_3, window_bounds = array<i64: 1, 1, 9, 169>}, {transform_indices = @transform_4, window_bounds = array<i64: 1, 1, 9, 169>}]} {
    %c0 = arith.constant 0 : index
    %c0_0 = arith.constant 0 : index
    %c0_1 = arith.constant 0 : index
    %c0_2 = arith.constant 0 : index
    %0 = vector.load %arg5[%c0, %c0_0, %c0_1, %c0_2] : memref<1x1x9x169xf32, #tpu.memory_space<vmem>>, vector<1x1x9x169xf32>
    %1 = vector.shape_cast %0 : vector<1x1x9x169xf32> to vector<9x169xf32>
    %2 = vector.extract_strided_slice %1 {offsets = [0, 0], sizes = [4, 169], strides = [1, 1]} : vector<9x169xf32> to vector<4x169xf32>
    %3 = arith.negf %2 : vector<4x169xf32>
    %4 = math.exp %3 : vector<4x169xf32>
    %cst = arith.constant 1.000000e+00 : f32
    %5 = vector.broadcast %cst : f32 to vector<4x169xf32>
    %6 = arith.addf %5, %4 : vector<4x169xf32>
    %7 = arith.divf %5, %6 : vector<4x169xf32>
    %8 = vector.extract_strided_slice %7 {offsets = [0, 0], sizes = [2, 169], strides = [1, 1]} : vector<4x169xf32> to vector<2x169xf32>
    %c0_3 = arith.constant 0 : index
    %c0_4 = arith.constant 0 : index
    %9 = vector.load %arg3[%c0_3, %c0_4] : memref<2x1xf32, #tpu.memory_space<vmem>>, vector<2x1xf32>
    %10 = vector.broadcast %9 : vector<2x1xf32> to vector<2x169xf32>
    %11 = arith.mulf %8, %10 : vector<2x169xf32>
    %c0_5 = arith.constant 0 : index
    %c0_6 = arith.constant 0 : index
    %12 = vector.load %arg2[%c0_5, %c0_6] : memref<2x169xf32, #tpu.memory_space<vmem>>, vector<2x169xf32>
    %13 = arith.addf %11, %12 : vector<2x169xf32>
    %c0_7 = arith.constant 0 : index
    %c0_8 = arith.constant 0 : index
    %c0_9 = arith.constant 0 : index
    %c0_10 = arith.constant 0 : index
    %14 = vector.load %arg6[%c0_7, %c0_8, %c0_9, %c0_10] : memref<1x1x9x169xf32, #tpu.memory_space<vmem>>, vector<1x1x2x169xf32>
    %15 = vector.shape_cast %14 : vector<1x1x2x169xf32> to vector<2x169xf32>
    %16 = vector.shape_cast %13 : vector<2x169xf32> to vector<1x1x2x169xf32>
    tpu.vector_store %arg6[%c0_7, %c0_8, %c0_9, %c0_10], %16 {strides = array<i32>} : memref<1x1x9x169xf32, #tpu.memory_space<vmem>>, vector<1x1x2x169xf32>,
    %17 = vector.extract_strided_slice %7 {offsets = [2, 0], sizes = [2, 169], strides = [1, 1]} : vector<4x169xf32> to vector<2x169xf32>
    %cst_11 = arith.constant 2.000000e+00 : f32
    %18 = vector.broadcast %cst_11 : f32 to vector<2x169xf32>
    %19 = arith.mulf %17, %18 : vector<2x169xf32>
    %20 = arith.mulf %19, %19 : vector<2x169xf32>
    %c0_12 = arith.constant 0 : index
    %c0_13 = arith.constant 0 : index
    %c0_14 = arith.constant 0 : index
    %21 = vector.load %arg4[%c0_12, %c0_13, %c0_14] : memref<1x2x1xf32, #tpu.memory_space<vmem>>, vector<1x2x1xf32>
    %22 = vector.shape_cast %21 : vector<1x2x1xf32> to vector<2x1xf32>
    %23 = vector.broadcast %22 : vector<2x1xf32> to vector<2x169xf32>
    %24 = arith.mulf %20, %23 : vector<2x169xf32>
    %c0_15 = arith.constant 0 : index
    %c0_16 = arith.constant 0 : index
    %c2 = arith.constant 2 : index
    %c0_17 = arith.constant 0 : index
    %25 = vector.load %arg6[%c0_15, %c0_16, %c2, %c0_17] : memref<1x1x9x169xf32, #tpu.memory_space<vmem>>, vector<1x1x2x169xf32>
    %26 = vector.shape_cast %25 : vector<1x1x2x169xf32> to vector<2x169xf32>
    %27 = vector.shape_cast %24 : vector<2x169xf32> to vector<1x1x2x169xf32>
    tpu.vector_store %arg6[%c0_15, %c0_16, %c2, %c0_17], %27 {strides = array<i32>} : memref<1x1x9x169xf32, #tpu.memory_space<vmem>>, vector<1x1x2x169xf32>,
    %28 = vector.extract_strided_slice %1 {offsets = [4, 0], sizes = [5, 169], strides = [1, 1]} : vector<9x169xf32> to vector<5x169xf32>
    %29 = arith.negf %28 : vector<5x169xf32>
    %30 = math.exp %29 : vector<5x169xf32>
    %cst_18 = arith.constant 1.000000e+00 : f32
    %31 = vector.broadcast %cst_18 : f32 to vector<5x169xf32>
    %32 = arith.addf %31, %30 : vector<5x169xf32>
    %33 = arith.divf %31, %32 : vector<5x169xf32>
    %c0_19 = arith.constant 0 : index
    %c0_20 = arith.constant 0 : index
    %c4 = arith.constant 4 : index
    %c0_21 = arith.constant 0 : index
    %34 = vector.load %arg6[%c0_19, %c0_20, %c4, %c0_21] : memref<1x1x9x169xf32, #tpu.memory_space<vmem>>, vector<1x1x5x169xf32>
    %35 = vector.shape_cast %34 : vector<1x1x5x169xf32> to vector<5x169xf32>
    %36 = vector.shape_cast %33 : vector<5x169xf32> to vector<1x1x5x169xf32>
    tpu.vector_store %arg6[%c0_19, %c0_20, %c4, %c0_21], %36 {strides = array<i32>} : memref<1x1x9x169xf32, #tpu.memory_space<vmem>>, vector<1x1x5x169xf32>,
    return
  }
  func.func @transform_0(%arg0: i32, %arg1: i32) -> (i32, i32) {
    %c0_i32 = arith.constant 0 : i32
    %c0_i32_0 = arith.constant 0 : i32
    %c0_i32_1 = arith.constant 0 : i32
    return %c0_i32, %c0_i32_0 : i32, i32
  }
  func.func @transform_1(%arg0: i32, %arg1: i32) -> (i32, i32) {
    %c0_i32 = arith.constant 0 : i32
    %c0_i32_0 = arith.constant 0 : i32
    %c0_i32_1 = arith.constant 0 : i32
    return %c0_i32, %c0_i32_0 : i32, i32
  }
  func.func @transform_2(%arg0: i32, %arg1: i32) -> (i32, i32, i32) {
    %c0_i32 = arith.constant 0 : i32
    %c0_i32_0 = arith.constant 0 : i32
    %c0_i32_1 = arith.constant 0 : i32
    return %arg1, %c0_i32, %c0_i32_0 : i32, i32, i32
  }
  func.func @transform_3(%arg0: i32, %arg1: i32) -> (i32, i32, i32, i32) {
    %c0_i32 = arith.constant 0 : i32
    %c0_i32_0 = arith.constant 0 : i32
    %c0_i32_1 = arith.constant 0 : i32
    return %arg0, %arg1, %c0_i32, %c0_i32_0 : i32, i32, i32, i32
  }
  func.func @transform_4(%arg0: i32, %arg1: i32) -> (i32, i32, i32, i32) {
    %c0_i32 = arith.constant 0 : i32
    %c0_i32_0 = arith.constant 0 : i32
    %c0_i32_1 = arith.constant 0 : i32
    return %arg0, %arg1, %c0_i32, %c0_i32_0 : i32, i32, i32, i32
  }
}

</mosaic_0001>

<llo_original>
// kernel: tpu_custom_call.1
$region0: #{tpu_custom_call.1}
  #allocation0 [shape = 'u32[]', space=smem, size = 0x4, offset = 0x4, fixed_abs, tag = 'smem constant byte address 0x4 - core index']
  #allocation1 [shape = 'u32[144,128]{1,0:T(1,128)}', space=vmem, size = 0x12000, scoped, tag = 'internal scratch']
  %s0 = inlined_call_operand.vmem [shape: f32[2,169], index: 0, kind: input, shape index: {}]
  %s1 = inlined_call_operand.vmem [shape: f32[2,1], index: 1, kind: input, shape index: {}]
  %s2 = inlined_call_operand.vmem [shape: f32[3,2,1], index: 2, kind: input, shape index: {}]
  %s3 = inlined_call_operand.vmem [shape: f32[2,3,9,169], index: 3, kind: input, shape index: {}]
  %s4 = inlined_call_operand.vmem [shape: f32[2,3,9,169], index: 4, kind: output, shape index: {}]
  %s5 = sld [smem:[#allocation0]]
  $region49: #{tpu_custom_call.1} parent=0
    _
  %s7 = ssub.s32 1, %s5
  %s8 = scalar_select 0, %s7, %s5
  loop: start=0, step=1, limit=8
  $region2: #{tpu_custom_call.1} parent=0 // loop_pre_header
    _
  $region3: #{tpu_custom_call.1} parent=0 // loop_header
    %s10 = sphi 0, %s14
    %p11 = scmp.ge.s32.totalorder %s10, 8
    %s17 = sphi 0, %s29
    %s18 = sphi 0, %s25
    %s19 = sphi 0, %s17
    %s20 = sphi 0, %s18
    %s21 = sphi 0, %s19
    %s22 = sphi 0, %s20
    %s30 = sphi 0, %s30
    %s32 = sphi 0, %s30
    %s33 = sphi 0, %s32
    %s47 = sphi 0, %s33
    %s51 = sphi 0, %s51
    %s53 = sphi 0, %s51
    %s54 = sphi 0, %s53
    %s68 = sphi 0, %s54
    %s74 = sphi 0, %s76
    %s77 = sphi 0, %s74
    %s78 = sphi 0, %s77
    %s94 = sphi 0, %s78
    %s102 = sphi 0, %s104
    %s105 = sphi 0, %s102
    %s106 = sphi 0, %s105
    %s122 = sphi 0, %s106
    %s130 = sphi 0, %s132
    %s133 = sphi 0, %s130
    %s134 = sphi 0, %s133
    %s150 = sphi 0, %s134
  $region4: #{tpu_custom_call.1} parent=0 // loop_header_branch
    %13 = sbr.rel (%p11) target = $region8
  $region5: #{tpu_custom_call.1} parent=0 // loop_body
    %s15 = ssub.s32 %s10, 1
    %s16 = ssub.s32 %s10, 2
    %s23 = sadd.s32 1, %s18
    %p24 = scmp.ge.s32.totalorder %s23, 3
    %s25 = scalar_select %p24, 0, %s23
    %s26 = sadd.s32 1, %s17
    %s27 = scalar_select %p24, %s26, %s17
    %p28 = scmp.ge.s32.totalorder %s27, 2
    %s29 = scalar_select %p28, 0, %s27
    %s31 = sadd.s32 %s30, 1
    %p34 = scmp.eq.s32.totalorder %s10, 5
    %p35 = scmp.ne.s32.totalorder %s30, %s32
    %p36 = scmp.eq.s32.totalorder %s10, 0
    %p37 = por %p35, %p36
    %p38 = scmp.ne.s32.totalorder %s30, %s32
    %p39 = scmp.eq.s32.totalorder %s15, 5
    %p40 = por %p38, %p39
    %p41 = scmp.ne.s32.totalorder %s32, %s33
    %p42 = scmp.eq.s32.totalorder %s15, 0
    %p43 = por %p41, %p42
    %p44 = scmp.ne.s32.totalorder %s32, %s33
    %p45 = scmp.eq.s32.totalorder %s16, 5
    %p46 = por %p44, %p45
    %p48 = scmp.ne.s32.totalorder %s33, %s47
    %p49 = scmp.eq.s32.totalorder %s16, 0
    %p50 = por %p48, %p49
    %s52 = sadd.s32 %s51, 1
    %p55 = scmp.eq.s32.totalorder %s10, 5
    %p56 = scmp.ne.s32.totalorder %s51, %s53
    %p57 = scmp.eq.s32.totalorder %s10, 0
    %p58 = por %p56, %p57
    %p59 = scmp.ne.s32.totalorder %s51, %s53
    %p60 = scmp.eq.s32.totalorder %s15, 5
    %p61 = por %p59, %p60
    %p62 = scmp.ne.s32.totalorder %s53, %s54
    %p63 = scmp.eq.s32.totalorder %s15, 0
    %p64 = por %p62, %p63
    %p65 = scmp.ne.s32.totalorder %s53, %s54
    %p66 = scmp.eq.s32.totalorder %s16, 5
    %p67 = por %p65, %p66
    %p69 = scmp.ne.s32.totalorder %s54, %s68
    %p70 = scmp.eq.s32.totalorder %s16, 0
    %p71 = por %p69, %p70
    %s72 = ssub.s32 %s18, %s25
    %p73 = scmp.eq.s32.totalorder %s72, 0
    %s75 = sadd.s32 %s74, 1
    %s76 = scalar_select %p73, %s74, %s75
    %p79 = pneg %p73
    %p80 = scmp.eq.s32.totalorder %s10, 5
    %p81 = por %p79, %p80
    %p82 = scmp.ne.s32.totalorder %s74, %s77
    %p83 = scmp.eq.s32.totalorder %s10, 0
    %p84 = por %p82, %p83
    %p85 = scmp.ne.s32.totalorder %s74, %s77
    %p86 = scmp.eq.s32.totalorder %s15, 5
    %p87 = por %p85, %p86
    %p88 = scmp.ne.s32.totalorder %s77, %s78
    %p89 = scmp.eq.s32.totalorder %s15, 0
    %p90 = por %p88, %p89
    %p91 = scmp.ne.s32.totalorder %s77, %s78
    %p92 = scmp.eq.s32.totalorder %s16, 5
    %p93 = por %p91, %p92
    %p95 = scmp.ne.s32.totalorder %s78, %s94
    %p96 = scmp.eq.s32.totalorder %s16, 0
    %p97 = por %p95, %p96
    %s98 = ssub.s32 %s17, %s29
    %s99 = ssub.s32 %s18, %s25
    %s100 = sor.u32 %s98, %s99
    %p101 = scmp.eq.s32.totalorder %s100, 0
    %s103 = sadd.s32 %s102, 1
    %s104 = scalar_select %p101, %s102, %s103
    %p107 = pneg %p101
    %p108 = scmp.eq.s32.totalorder %s10, 5
    %p109 = por %p107, %p108
    %p110 = scmp.ne.s32.totalorder %s102, %s105
    %p111 = scmp.eq.s32.totalorder %s10, 0
    %p112 = por %p110, %p111
    %p113 = scmp.ne.s32.totalorder %s102, %s105
    %p114 = scmp.eq.s32.totalorder %s15, 5
    %p115 = por %p113, %p114
    %p116 = scmp.ne.s32.totalorder %s105, %s106
    %p117 = scmp.eq.s32.totalorder %s15, 0
    %p118 = por %p116, %p117
    %p119 = scmp.ne.s32.totalorder %s105, %s106
    %p120 = scmp.eq.s32.totalorder %s16, 5
    %p121 = por %p119, %p120
    %p123 = scmp.ne.s32.totalorder %s106, %s122
    %p124 = scmp.eq.s32.totalorder %s16, 0
    %p125 = por %p123, %p124
    %s126 = ssub.s32 %s17, %s29
    %s127 = ssub.s32 %s18, %s25
    %s128 = sor.u32 %s126, %s127
    %p129 = scmp.eq.s32.totalorder %s128, 0
    %s131 = sadd.s32 %s130, 1
    %s132 = scalar_select %p129, %s130, %s131
    %p135 = pneg %p129
    %p136 = scmp.eq.s32.totalorder %s10, 5
    %p137 = por %p135, %p136
    %p138 = scmp.ne.s32.totalorder %s130, %s133
    %p139 = scmp.eq.s32.totalorder %s10, 0
    %p140 = por %p138, %p139
    %p141 = scmp.ne.s32.totalorder %s130, %s133
    %p142 = scmp.eq.s32.totalorder %s15, 5
    %p143 = por %p141, %p142
    %p144 = scmp.ne.s32.totalorder %s133, %s134
    %p145 = scmp.eq.s32.totalorder %s15, 0
    %p146 = por %p144, %p145
    %p147 = scmp.ne.s32.totalorder %s133, %s134
    %p148 = scmp.eq.s32.totalorder %s16, 5
    %p149 = por %p147, %p148
    %p151 = scmp.ne.s32.totalorder %s134, %s150
    %p152 = scmp.eq.s32.totalorder %s16, 0
    %p153 = por %p151, %p152
    %p154 = scmp.le.s32.totalorder 1, %s10
    %p155 = scmp.lt.s32.totalorder %s10, 7
    %p156 = pnand %p154, %p155
    %p157 = pneg %p156
    // Predicated region
    $region9: #{tpu_custom_call.1} parent=5 // pred_check
      _
    $region10: #{tpu_custom_call.1} parent=5 // pred_check_branch
      %159 = sbr.rel (%p156) target = $region12
    $region11: #{tpu_custom_call.1} parent=5 // pred_region
      %s160 = ssub.s32 %s10, 1
      // Predicated region
      $region13: #{tpu_custom_call.1} parent=11 // pred_check
        %p161 = pneg %p43
      $region14: #{tpu_custom_call.1} parent=11 // pred_check_branch
        %163 = sbr.rel (%p161) target = $region16
      $region15: #{tpu_custom_call.1} parent=11 // pred_region
        _
      $region16: #{tpu_custom_call.1} parent=11 // pred_fallthru
        _
      // Predicated region
      $region17: #{tpu_custom_call.1} parent=11 // pred_check
        %p164 = pneg %p64
      $region18: #{tpu_custom_call.1} parent=11 // pred_check_branch
        %166 = sbr.rel (%p164) target = $region20
      $region19: #{tpu_custom_call.1} parent=11 // pred_region
        _
      $region20: #{tpu_custom_call.1} parent=11 // pred_fallthru
        _
    $region12: #{tpu_custom_call.1} parent=5 // pred_fallthru
      _
    %p167 = scmp.lt.s32.totalorder %s10, 6
    // Predicated region
    $region21: #{tpu_custom_call.1} parent=5 // pred_check
      %p168 = pneg %p167
    $region22: #{tpu_custom_call.1} parent=5 // pred_check_branch
      %170 = sbr.rel (%p168) target = $region24
    $region23: #{tpu_custom_call.1} parent=5 // pred_region
      // Predicated region
      $region25: #{tpu_custom_call.1} parent=23 // pred_check
        %p171 = pneg %p84
      $region26: #{tpu_custom_call.1} parent=23 // pred_check_branch
        %173 = sbr.rel (%p171) target = $region28
      $region27: #{tpu_custom_call.1} parent=23 // pred_region
        %p174 = scmp.lt.s32.totalorder %s18, 2
        %s175 = scalar_select %p174, %s18, 2
        %s176 = smul.addr %s175, 2
        %s177 = scalar_lea.vmem %s2, %s176
      $region28: #{tpu_custom_call.1} parent=23 // pred_fallthru
        _
      // Predicated region
      $region29: #{tpu_custom_call.1} parent=23 // pred_check
        %p178 = pneg %p112
      $region30: #{tpu_custom_call.1} parent=23 // pred_check_branch
        %180 = sbr.rel (%p178) target = $region32
      $region31: #{tpu_custom_call.1} parent=23 // pred_region
        %p181 = scmp.lt.s32.totalorder %s17, 1
        %s182 = scalar_select %p181, %s17, 1
        %p183 = scmp.lt.s32.totalorder %s18, 2
        %s184 = scalar_select %p183, %s18, 2
        %s185 = smul.addr %s184, 4
        %s186 = smul.addr %s182, 12
        %s187 = sadd.s32 %s185, %s186
        %s188 = smul.addr %s187, 8
        %s189 = scalar_lea.vmem %s3, %s188
      $region32: #{tpu_custom_call.1} parent=23 // pred_fallthru
        _
    $region24: #{tpu_custom_call.1} parent=5 // pred_fallthru
      _
    %p190 = scmp.le.s32.totalorder 1, %s10
    %p191 = scmp.lt.s32.totalorder %s10, 7
    %p192 = pnand %p190, %p191
    %p193 = pneg %p192
    // Predicated region
    $region33: #{tpu_custom_call.1} parent=5 // pred_check
      _
    $region34: #{tpu_custom_call.1} parent=5 // pred_check_branch
      %195 = sbr.rel (%p192) target = $region36
    $region35: #{tpu_custom_call.1} parent=5 // pred_region
      %s196 = ssub.s32 %s10, 1
      %p197 = pneg %p43
      %p198 = pneg %p40
      %p199 = pneg %p64
      %p200 = pneg %p61
      %p201 = scmp.lt.s32.totalorder %s20, 2
      %s202 = scalar_select %p201, %s20, 2
      %s203 = smul.addr %s202, 2
      %s204 = scalar_lea.vmem %s2, %s203
      %p205 = pneg %p90
      %p206 = pneg %p87
      %p207 = scmp.lt.s32.totalorder %s19, 1
      %s208 = scalar_select %p207, %s19, 1
      %p209 = scmp.lt.s32.totalorder %s20, 2
      %s210 = scalar_select %p209, %s20, 2
      %s211 = smul.addr %s210, 4
      %s212 = smul.addr %s208, 12
      %s213 = sadd.s32 %s211, %s212
      %s214 = smul.addr %s213, 8
      %s215 = scalar_lea.vmem %s3, %s214
      %p216 = pneg %p118
      %p217 = pneg %p115
      %p218 = pneg %p146
      %p219 = pneg %p143
      %p220 = scmp.lt.s32.totalorder %s19, 1
      %s221 = scalar_select %p220, %s19, 1
      %p222 = scmp.lt.s32.totalorder %s20, 2
      %s223 = scalar_select %p222, %s20, 2
      %s224 = smul.addr %s223, 4
      %s225 = smul.addr %s221, 12
      %s226 = sadd.s32 %s224, %s225
      %s227 = smul.addr %s226, 8
      %s228 = scalar_lea.vmem %s4, %s227
      %p229 = scmp.lt.s32.totalorder %s20, 2
      %s230 = scalar_select %p229, %s20, 2
      %s231 = smul.addr %s230, 2
      %s232 = scalar_lea.vmem %s2, %s231
      %p233 = scmp.lt.s32.totalorder %s19, 1
      %s234 = scalar_select %p233, %s19, 1
      %p235 = scmp.lt.s32.totalorder %s20, 2
      %s236 = scalar_select %p235, %s20, 2
      %s237 = smul.addr %s236, 4
      %s238 = smul.addr %s234, 12
      %s239 = sadd.s32 %s237, %s238
      %s240 = smul.addr %s239, 8
      %s241 = scalar_lea.vmem %s3, %s240
      %p242 = scmp.lt.s32.totalorder %s19, 1
      %s243 = scalar_select %p242, %s19, 1
      %p244 = scmp.lt.s32.totalorder %s20, 2
      %s245 = scalar_select %p244, %s20, 2
      %s246 = smul.addr %s245, 4
      %s247 = smul.addr %s243, 12
      %s248 = sadd.s32 %s246, %s247
      %s249 = smul.addr %s248, 8
      %s250 = scalar_lea.vmem %s4, %s249
      %v251 = vld [vmem:[%s241] sm:$0xff]
      %v252 = vld [vmem:[%s241 + $0x8] sm:$0xff]
      %v253 = vld [vmem:[%s241 + $0x10] sm:$0x1]
      %v254 = vld [vmem:[%s241 + $0x18] sm:$0x1]
      %v255 = vxor.u32 %v251, 2147483648
      %v256 = vxor.u32 %v252, 2147483648
      %v257 = vmul.f32 %v255, 1.442695
      %v258 = vpow.pop %v257
      %v259 = vmul.f32 %v256, 1.442695
      %v260 = vpow.pop %v259
      %v261 = vadd.f32 %v258, 1.0
      %v262 = vadd.f32 %v260, 1.0
      %v263 = vrcp.pop %v261
      %v264 = vmul.f32 1.0, %v263
      %v265 = vrcp.pop %v262
      %v266 = vmul.f32 1.0, %v265
      %v267 = vld [vmem:[%s1] sm:$0x3]
      %269 = vset.pattern.permute.xlu0 0
      %270 = vperm.xlu0 %269, %v267
      %v271 = vpop.permute.xlu0 %270
      %v273 = vmul.f32 %v264, %v271
      %v274 = vmul.f32 %v266, %v271
      %v275 = vld [vmem:[%s0] sm:$0xf]
      %v278 = vunpack.c.l.s4 1983009808
      %v279 = vunpack.c.0.s8 %v278
      %v280 = vlaneseq
      %v281 = vshrl.u32 %v280, 7
      %v282 = vsub.s32 %v279, %v281
      %v283 = vrot.slane %v275, %v282
      %v284 = vcombine.high %v283, %v283
      %v287 = vadd.f32 %v273, %v283
      %v288 = vadd.f32 %v274, %v284
      %289 = vst [vmem:[%s250] sm:$0x3] %v287
      %vm290 = vcmask 328704
      %291 = vst.msk [vmem:[%s250 + $0x8] sm:$0x3] %vm290, %v288
      %v292 = vmul.f32 %v264, 2.0
      %v293 = vmul.f32 %v266, 2.0
      %v294 = vmul.f32 %v292, %v292
      %v295 = vmul.f32 %v293, %v293
      %v296 = vld [vmem:[%s232] sm:$0x3]
      %298 = vset.pattern.permute.xlu0 0
      %299 = vperm.xlu0 %298, %v296
      %v300 = vpop.permute.xlu0 %299
      %v301 = vrot.slane %v300, 6
      %v303 = vmul.f32 %v294, %v301
      %v304 = vmul.f32 %v295, %v301
      %305 = vst [vmem:[%s250] sm:$0xc] %v303
      %vm306 = vcmask 330754
      %307 = vst.msk [vmem:[%s250 + $0x8] sm:$0xc] %vm306, %v304
      %v308 = vxor.u32 %v253, 2147483648
      %v309 = vxor.u32 %v254, 2147483648
      %v310 = vmul.f32 %v308, 1.442695
      %v311 = vpow.pop %v310
      %v312 = vmul.f32 %v309, 1.442695
      %v313 = vpow.pop %v312
      %v314 = vadd.f32 %v311, 1.0
      %v315 = vadd.f32 %v313, 1.0
      %v316 = vrcp.pop %v314
      %v317 = vmul.f32 1.0, %v316
      %v318 = vrcp.pop %v315
      %v319 = vmul.f32 1.0, %v318
      %320 = vst [vmem:[%s250] sm:$0xf0] %v264
      %vm321 = vcmask 334852
      %322 = vst.msk [vmem:[%s250 + $0x8] sm:$0xf0] %vm321, %v266
      %323 = vst [vmem:[%s250 + $0x10] sm:$0x1] %v317
      %vm324 = vcmask 327680
      %325 = vst.msk [vmem:[%s250 + $0x18] sm:$0x1] %vm324, %v319
      %p326 = scmp.lt.s32.totalorder %s19, 1
      %s327 = scalar_select %p326, %s19, 1
      %p328 = scmp.lt.s32.totalorder %s20, 2
      %s329 = scalar_select %p328, %s20, 2
      %s330 = smul.addr %s329, 4
      %s331 = smul.addr %s327, 12
      %s332 = sadd.s32 %s330, %s331
      %s333 = smul.addr %s332, 8
      %s334 = scalar_lea.vmem %s4, %s333
      // Predicated region
      $region37: #{tpu_custom_call.1} parent=35 // pred_check
        %p335 = pneg %p143
      $region38: #{tpu_custom_call.1} parent=35 // pred_check_branch
        %337 = sbr.rel (%p335) target = $region40
      $region39: #{tpu_custom_call.1} parent=35 // pred_region
        _
      $region40: #{tpu_custom_call.1} parent=35 // pred_fallthru
        _
    $region36: #{tpu_custom_call.1} parent=5 // pred_fallthru
      _
    %p338 = scmp.le.s32.totalorder 2, %s10
    // Predicated region
    $region41: #{tpu_custom_call.1} parent=5 // pred_check
      %p339 = pneg %p338
    $region42: #{tpu_custom_call.1} parent=5 // pred_check_branch
      %341 = sbr.rel (%p339) target = $region44
    $region43: #{tpu_custom_call.1} parent=5 // pred_region
      %s342 = ssub.s32 %s10, 2
      // Predicated region
      $region45: #{tpu_custom_call.1} parent=43 // pred_check
        %p343 = pneg %p149
      $region46: #{tpu_custom_call.1} parent=43 // pred_check_branch
        %345 = sbr.rel (%p343) target = $region48
      $region47: #{tpu_custom_call.1} parent=43 // pred_region
        %p346 = scmp.lt.s32.totalorder %s21, 1
        %s347 = scalar_select %p346, %s21, 1
        %p348 = scmp.lt.s32.totalorder %s22, 2
        %s349 = scalar_select %p348, %s22, 2
        %s350 = smul.addr %s349, 4
        %s351 = smul.addr %s347, 12
        %s352 = sadd.s32 %s350, %s351
        %s353 = smul.addr %s352, 8
        %s354 = scalar_lea.vmem %s4, %s353
      $region48: #{tpu_custom_call.1} parent=43 // pred_fallthru
        _
    $region44: #{tpu_custom_call.1} parent=5 // pred_fallthru
      _
  $region6: #{tpu_custom_call.1} parent=0 // loop_footer
    %s14 = sadd.s32 1, %s10
  $region7: #{tpu_custom_call.1} parent=0 // loop_footer_branch
    %9 = sbr.rel target = $region3
  $region8: #{tpu_custom_call.1} parent=0 // loop_exit
    _

</llo_original>
